<compile_context>
chip_gen: v5e
topology: v5e:2x2
jax: 0.10.0
libtpu: 0.0.40
codegen_flags: <defaults>
</compile_context>

<pallas_src>
import functools
import math

import jax
import jax.numpy as jnp
from jax.experimental import pallas as pl
from jax.experimental.pallas import tpu as pltpu


# ----------------------------- config ---------------------------------------
class Config:
    context_len = 16
    d_model = 32
    dropout = 0.1  # nn.Dropout is identity in eval mode (forward implemented here)


LANES = 128                 # vreg lane width (fast axis)
MAX_BLOCK_ROWS = 2048       # 2048 x 128 x 4 B = 1 MiB per f32 buffer
_PALLAS_MIN_ELEMS = 1 << 14  # below this a fused XLA add beats kernel dispatch


# ------------------------------ PE table ------------------------------------
def _pe_table(seq_len: int, d_model: int) -> jnp.ndarray:
    """[seq_len, d_model] float32; even cols sin, odd cols cos (PyTorch layout)."""
    position = jnp.arange(seq_len, dtype=jnp.float32)[:, None]
    div_term = jnp.exp(
        jnp.arange(0, d_model, 2, dtype=jnp.float32) * (-math.log(10000.0) / d_model)
    )
    ang = position * div_term                                    # [S, D//2]
    return jnp.stack([jnp.sin(ang), jnp.cos(ang)], axis=-1).reshape(seq_len, d_model)


# ------------------------------ Pallas kernel --------------------------------
def _pe_add_kernel(x_ref, pe_ref, o_ref):
    # Pure vadd stream; the PE block is resident in VMEM (constant index_map).
    # TODO(synk): training-mode dropout (pltpu.prng_random_bits mask + scale)
    # intentionally omitted; forward matches eval-mode nn.Dropout (identity).
    o_ref[...] = x_ref[...] + pe_ref[...]


def _choose_block_rows(rows: int, unit: int) -> int:
    """Block height: multiple of `unit` (lcm(pe_rows, sublanes)), <= MAX_BLOCK_ROWS,
    aiming for >= 2 balanced blocks (v7x megacore) when the array allows it."""
    if rows <= unit:
        return rows                                   # single block == full array dims
    max_units = MAX_BLOCK_ROWS // unit
    if max_units == 0:
        return 0                                      # caller falls back to XLA
    half = -(-rows // 2)                              # ceil(rows / 2)
    half_units = -(-half // unit)                     # ceil(half / unit)
    return min(max_units, half_units) * unit


# --------------------------------- wrapper -----------------------------------
@functools.partial(jax.jit, static_argnames=("context_len", "use_pallas"))
def sinusoidal_positional_encoding(x, *, context_len=Config.context_len,
                                   use_pallas=None):
    """x: [B, S, D]. Returns x + pe[:, :S] (eval-mode dropout = identity)."""
    B, S, D = x.shape
    assert S <= context_len, "sequence length exceeds context_len"
    assert D % 2 == 0, "d_model must be even (matches the PyTorch module)"

    pe = _pe_table(S, D).astype(x.dtype)              # [S, D]; constant-folded under jit
    total = B * S * D

    itemsize = x.dtype.itemsize
    sublanes = 8 * (4 // itemsize) if itemsize in (1, 2, 4) else 0
    pallas_ok = sublanes > 0 and (S * D) % LANES == 0
    want_pallas = use_pallas if use_pallas is not None else total >= _PALLAS_MIN_ELEMS

    if pallas_ok and want_pallas:
        pe_rows = (S * D) // LANES
        rows = total // LANES                         # = B * pe_rows, no padding needed
        unit = (pe_rows * sublanes) // math.gcd(pe_rows, sublanes)   # lcm
        block_rows = _choose_block_rows(rows, unit)
        if block_rows > 0:
            grid = pl.cdiv(rows, block_rows)
            # Lane-dense views: free reshapes of contiguous buffers (no pad/slice).
            x_2d = x.reshape(rows, LANES)
            pe_2d = jnp.tile(pe.reshape(pe_rows, LANES), (block_rows // pe_rows, 1))

            out_2d = pl.pallas_call(
                _pe_add_kernel,
                out_shape=jax.ShapeDtypeStruct((rows, LANES), x.dtype),
                grid_spec=pltpu.PrefetchScalarGridSpec(
                    num_scalar_prefetch=0,
                    grid=(grid,),
                    in_specs=[
                        pl.BlockSpec((block_rows, LANES), lambda i: (i, 0)),
                        pl.BlockSpec((block_rows, LANES), lambda i: (0, 0)),  # resident
                    ],
                    out_specs=pl.BlockSpec((block_rows, LANES), lambda i: (i, 0)),
                ),
                compiler_params=pltpu.CompilerParams(
                    dimension_semantics=("parallel",),   # v7x: shard blocks across TCs
                ),
            )(x_2d, pe_2d)
            return out_2d.reshape(B, S, D)

    # Tiny inputs / non-lane-divisible shapes: fused XLA broadcast-add.
    return x + pe[None, :, :]


# --------------------------------- main --------------------------------------
if __name__ == "__main__":
    cfg = Config()
    key = jax.random.PRNGKey(0)
    k1, k2 = jax.random.split(key)

    # Nominal small shapes (batch=2, seq=8, hidden=32); force the Pallas path
    # so the kernel itself is exercised.
    B, S, D = 2, 8, cfg.d_model
    x = jax.random.normal(k1, (B, S, D), dtype=jnp.float32)
    out = sinusoidal_positional_encoding(x, context_len=cfg.context_len, use_pallas=True)
    out = jax.block_until_ready(out)
    ref = x + _pe_table(S, D)[None, :, :]
    assert out.shape == (B, S, D)
    assert jnp.allclose(out, ref, atol=1e-5, rtol=1e-5), "mismatch vs reference (small)"

    # Larger shape exercising the multi-block / megacore path (grid >= 2).
    B2, S2 = 64, cfg.context_len
    x2 = jax.random.normal(k2, (B2, S2, D), dtype=jnp.float32)
    out2 = sinusoidal_positional_encoding(x2, context_len=cfg.context_len, use_pallas=True)
    out2 = jax.block_until_ready(out2)
    ref2 = x2 + _pe_table(S2, D)[None, :, :]
    assert jnp.allclose(out2, ref2, atol=1e-5, rtol=1e-5), "mismatch vs reference (large)"

    print("KERNEL_OK")
</pallas_src>

<mosaic_0001>
module attributes {stable_mosaic.version = 11 : i64} {
  func.func @_pe_add_kernel(%arg0: i32, %arg1: memref<4x128xf32, #tpu.memory_space<vmem>>, %arg2: memref<4x128xf32, #tpu.memory_space<vmem>>, %arg3: memref<4x128xf32, #tpu.memory_space<vmem>>) attributes {dimension_semantics = [#tpu.dimension_semantics<parallel>], iteration_bounds = array<i64: 1>, scalar_prefetch = 0 : i64, scratch_operands = 0 : i64, tpu.core_type = #tpu.core_type<tc>, window_params = [{transform_indices = @transform_0, window_bounds = array<i64: 4, 128>}, {pipeline_mode = #tpu.pipeline_mode<synchronous>, transform_indices = @transform_1, window_bounds = array<i64: 4, 128>}, {transform_indices = @transform_2, window_bounds = array<i64: 4, 128>}]} {
    %c0 = arith.constant 0 : index
    %c0_0 = arith.constant 0 : index
    %0 = vector.load %arg1[%c0, %c0_0] : memref<4x128xf32, #tpu.memory_space<vmem>>, vector<4x128xf32>
    %c0_1 = arith.constant 0 : index
    %c0_2 = arith.constant 0 : index
    %1 = vector.load %arg2[%c0_1, %c0_2] : memref<4x128xf32, #tpu.memory_space<vmem>>, vector<4x128xf32>
    %2 = arith.addf %0, %1 : vector<4x128xf32>
    %c0_3 = arith.constant 0 : index
    %c0_4 = arith.constant 0 : index
    %3 = vector.load %arg3[%c0_3, %c0_4] : memref<4x128xf32, #tpu.memory_space<vmem>>, vector<4x128xf32>
    tpu.vector_store %arg3[%c0_3, %c0_4], %2 {strides = array<i32>} : memref<4x128xf32, #tpu.memory_space<vmem>>, vector<4x128xf32>,
    return
  }
  func.func @transform_0(%arg0: i32) -> (i32, i32) {
    %c0_i32 = arith.constant 0 : i32
    %c0_i32_0 = arith.constant 0 : i32
    return %arg0, %c0_i32 : i32, i32
  }
  func.func @transform_1(%arg0: i32) -> (i32, i32) {
    %c0_i32 = arith.constant 0 : i32
    %c0_i32_0 = arith.constant 0 : i32
    %c0_i32_1 = arith.constant 0 : i32
    return %c0_i32, %c0_i32_0 : i32, i32
  }
  func.func @transform_2(%arg0: i32) -> (i32, i32) {
    %c0_i32 = arith.constant 0 : i32
    %c0_i32_0 = arith.constant 0 : i32
    return %arg0, %c0_i32 : i32, i32
  }
}

</mosaic_0001>

<llo_original>
// kernel: sinusoidal_positional_encoding.1
$region0: #{sinusoidal_positional_encoding.1}
  #allocation0 [shape = 'u32[]', space=smem, size = 0x4, offset = 0x4, fixed_abs, tag = 'smem constant byte address 0x4 - core index']
  #allocation1 [shape = 'u32[72,128]{1,0:T(1,128)}', space=vmem, size = 0x9000, scoped, tag = 'internal scratch']
  %s0 = inlined_call_operand.vmem [shape: f32[4,128], index: 0, kind: input, shape index: {}]
  %s1 = inlined_call_operand.vmem [shape: f32[4,128], index: 1, kind: input, shape index: {}]
  %s2 = inlined_call_operand.vmem [shape: f32[4,128], index: 2, kind: output, shape index: {}]
  %s3 = sld [smem:[#allocation0]]
  $region18: #{sinusoidal_positional_encoding.1} parent=0
    _
  %s5 = ssub.s32 1, %s3
  %s6 = scalar_select 0, %s5, %s3
  // Predicated region
  $region2: #{sinusoidal_positional_encoding.1} parent=0 // pred_check
    _
  $region3: #{sinusoidal_positional_encoding.1} parent=0 // pred_check_branch
    %8 = sbr.rel (0) target = $region5
  $region4: #{sinusoidal_positional_encoding.1} parent=0 // pred_region
    _
  $region5: #{sinusoidal_positional_encoding.1} parent=0 // pred_fallthru
    _
  // Predicated region
  $region6: #{sinusoidal_positional_encoding.1} parent=0 // pred_check
    _
  $region7: #{sinusoidal_positional_encoding.1} parent=0 // pred_check_branch
    %10 = sbr.rel (0) target = $region9
  $region8: #{sinusoidal_positional_encoding.1} parent=0 // pred_region
    _
  $region9: #{sinusoidal_positional_encoding.1} parent=0 // pred_fallthru
    _
  %v11 = vld [vmem:[%s0] sm:$0xf]
  %v12 = vld [vmem:[%s1] sm:$0xf]
  %v13 = vadd.f32 %v11, %v12
  %14 = vst [vmem:[%s2] sm:$0xf] %v13
  // Predicated region
  $region10: #{sinusoidal_positional_encoding.1} parent=0 // pred_check
    _
  $region11: #{sinusoidal_positional_encoding.1} parent=0 // pred_check_branch
    %16 = sbr.rel (0) target = $region13
  $region12: #{sinusoidal_positional_encoding.1} parent=0 // pred_region
    _
  $region13: #{sinusoidal_positional_encoding.1} parent=0 // pred_fallthru
    _
  // Predicated region
  $region14: #{sinusoidal_positional_encoding.1} parent=0 // pred_check
    _
  $region15: #{sinusoidal_positional_encoding.1} parent=0 // pred_check_branch
    %18 = sbr.rel (0) target = $region17
  $region16: #{sinusoidal_positional_encoding.1} parent=0 // pred_region
    _
  $region17: #{sinusoidal_positional_encoding.1} parent=0 // pred_fallthru
    _

</llo_original>
